<compile_context>
chip_gen: v6e
topology: v6e:2x2x1
jax: 0.10.0
libtpu: 0.0.40
codegen_flags: <defaults>
</compile_context>

<pallas_src>
import jax
import jax.numpy as jnp
import numpy as np
from jax.experimental import pallas as pl
from jax.experimental.pallas import tpu as pltpu


# --------------------------------------------------------------------------------------
# Fused forward kernel.  One grid step handles a block of BB batch elements:
#   mu     = encoder_proj(encoder(input_embedding(clamp(token,0)) * pad_mask))   (BB, O, T*r)
#   target = feat^T                                                              (BB, O, Tf)
#   conds  = feat^T masked to the first `prefix` frames                          (BB, O, Tf)
#   spks   = spk_embed_affine_layer(F.normalize(embedding, dim=1))               (BB, O)
#   mask   = ~make_pad_mask(h_lengths)                                           (BB, 1, T*r)
# --------------------------------------------------------------------------------------
def _fused_kernel(hlen_ref, pfx_ref,                           # scalar-prefetch (SMEM, full (B,))
                  tok_ref, tbl_ref, pb_ref,                    # token ids, fused table^T, proj bias
                  emb_ref, sw_ref, sb_ref,                     # spk embedding, spk W, spk b
                  feat_ref,                                    # feat in native (BB, Tf, O) layout
                  mu_ref, target_ref, conds_ref, spks_ref, mask_ref):
    g = pl.program_id(0)
    BB, Tmel = tok_ref.shape
    O, V = tbl_ref.shape
    Tf = feat_ref.shape[1]

    # ---- spks: F.normalize(embedding, dim=1) + affine.  One (BB,S)@(S,O) matmul for the whole
    #      batch block; rsqrt lands on the EUP slot.  (eps on the squared norm ~ clamp_min(1e-12).)
    e = emb_ref[...].astype(jnp.float32)                                     # (BB, S)
    inv = jax.lax.rsqrt(jnp.maximum(jnp.sum(e * e, axis=1, keepdims=True), 1e-24))
    spks = jnp.dot(e * inv, sw_ref[...], preferred_element_type=jnp.float32) + sb_ref[...]
    spks_ref[...] = spks.astype(spks_ref.dtype)

    # ---- invariants hoisted out of the per-batch loop
    tbl = tbl_ref[...]                                                       # (O, V) fused table^T
    pb = pb_ref[...]                                                         # (O, 1) proj bias
    row_v = jax.lax.broadcasted_iota(jnp.int32, (V, Tmel), 0)
    t_mel = jax.lax.broadcasted_iota(jnp.int32, (1, Tmel), 1)
    t_f = jax.lax.broadcasted_iota(jnp.int32, (1, Tf), 1)
    # (O, O) identity: feat^T is computed on the (idle) MXU with attention-style dimension numbers
    # (contract the last dim of both operands), avoiding any XLU relayout of a (Tf, O) tile.
    eye_o = (jax.lax.broadcasted_iota(jnp.int32, (O, O), 0)
             == jax.lax.broadcasted_iota(jnp.int32, (O, O), 1)).astype(jnp.float32)

    ids_all = jnp.maximum(tok_ref[...], 0)                                   # torch.clamp(token, 0)

    for i in range(BB):                                                      # static unroll, BB in {1,2}
        hlen = hlen_ref[g * BB + i]       # valid mel frames = token_len * token_mel_ratio
        pfx = pfx_ref[g * BB + i]         # conds prefix length

        # decoder mel mask (~make_pad_mask(h_lengths)); the same f32 tensor masks mu below.
        valid = (t_mel < hlen).astype(jnp.float32)                           # (1, Tmel)
        mask_ref[i] = valid.astype(mask_ref.dtype)

        # mu: fused (embedding gather -> token_mel_ratio repeat -> encoder_proj), lane-dense (O, Tmel).
        # NOTE: out-of-range token ids (>= V) give an all-zero one-hot column (mu = bias there),
        #       unlike the torch gather which would raise; only matters on invalid input.
        onehot = (row_v == ids_all[i:i + 1, :]).astype(tbl.dtype)            # unmasked (V, Tmel)
        mu = jnp.dot(tbl, onehot, preferred_element_type=jnp.float32)        # (O,V)@(V,Tmel) on MXU
        mu = mu * valid + pb                                                 # pad-mask result, + bias
        mu_ref[i] = mu.astype(mu_ref.dtype)

        # target / conds: feat^T via the tiny identity matmul (MXU), feat read once from HBM.
        f = feat_ref[i]                                                      # (Tf, O)
        ft = jax.lax.dot_general(eye_o, f, (((1,), (1,)), ((), ())),
                                 preferred_element_type=jnp.float32)         # (O, Tf) == f^T
        target_ref[i] = ft.astype(target_ref.dtype)
        cmask = (t_f < pfx).astype(jnp.float32)                              # prefix lane mask (1, Tf)
        conds_ref[i] = (ft * cmask).astype(conds_ref.dtype)


def _grid_steps(batch_size: int) -> int:
    """One grid step per TensorCore: 1 fat step on single-TC chips (v5e/v6e), 2 parallel steps on
    multi-TC chips (v4 megacore / v5p / v7x) so both cores get work."""
    try:
        kind = jax.devices()[0].device_kind.lower()
    except Exception:
        return 1
    multi_tc = ("v4" in kind) or ("v5p" in kind) or ("7" in kind)
    return 2 if (multi_tc and batch_size >= 2 and batch_size % 2 == 0) else 1


def fused_forward(h_len, prefix_idx, tok_up, table_t, proj_b_col,
                  embedding, spk_w, spk_b_row, feat, out_dtype=jnp.float32):
    B, Tmel = tok_up.shape
    O, V = table_t.shape
    S = embedding.shape[1]
    Tf = feat.shape[1]

    steps = _grid_steps(B)
    BB = B // steps

    grid_spec = pltpu.PrefetchScalarGridSpec(
        num_scalar_prefetch=2,
        grid=(steps,),
        in_specs=[
            pl.BlockSpec((BB, Tmel),   lambda g, hl, px: (g, 0)),     # upsampled token ids
            pl.BlockSpec((O, V),       lambda g, hl, px: (0, 0)),     # fused (embed@proj_w)^T, f32
            pl.BlockSpec((O, 1),       lambda g, hl, px: (0, 0)),     # encoder_proj bias (column)
            pl.BlockSpec((BB, S),      lambda g, hl, px: (g, 0)),     # speaker embeddings
            pl.BlockSpec((S, O),       lambda g, hl, px: (0, 0)),     # spk affine weight
            pl.BlockSpec((1, O),       lambda g, hl, px: (0, 0)),     # spk affine bias
            pl.BlockSpec((BB, Tf, O),  lambda g, hl, px: (g, 0, 0)),  # feat, native layout
        ],
        out_specs=(
            pl.BlockSpec((BB, O, Tmel), lambda g, hl, px: (g, 0, 0)),  # mu
            pl.BlockSpec((BB, O, Tf),   lambda g, hl, px: (g, 0, 0)),  # target = feat^T
            pl.BlockSpec((BB, O, Tf),   lambda g, hl, px: (g, 0, 0)),  # conds
            pl.BlockSpec((BB, O),       lambda g, hl, px: (g, 0)),     # spks
            pl.BlockSpec((BB, 1, Tmel), lambda g, hl, px: (g, 0, 0)),  # mel mask
        ),
    )
    out_shape = (
        jax.ShapeDtypeStruct((B, O, Tmel), out_dtype),
        jax.ShapeDtypeStruct((B, O, Tf), out_dtype),
        jax.ShapeDtypeStruct((B, O, Tf), out_dtype),
        jax.ShapeDtypeStruct((B, O), jnp.float32),
        jax.ShapeDtypeStruct((B, 1, Tmel), jnp.float32),
    )
    return pl.pallas_call(
        _fused_kernel,
        grid_spec=grid_spec,
        out_shape=out_shape,
        compiler_params=pltpu.CompilerParams(dimension_semantics=("parallel",)),
    )(h_len.astype(jnp.int32), prefix_idx.astype(jnp.int32),
      tok_up.astype(jnp.int32), table_t.astype(jnp.float32),
      proj_b_col.astype(jnp.float32), embedding.astype(jnp.float32),
      spk_w.astype(jnp.float32), spk_b_row.astype(jnp.float32),
      feat.astype(jnp.float32))


# --------------------------------------------------------------------------------------
# Module wrapper (parameter prep + thin glue in plain JAX; all per-step compute in Pallas)
# --------------------------------------------------------------------------------------
class StreamMaskedDiffWithXvecPallas:
    def __init__(self, key, input_size=32, output_size=16, spk_embed_dim=16,
                 vocab_size=64, token_mel_ratio=2, pre_lookahead_len=3,
                 out_dtype=jnp.float32):
        self.input_size = input_size
        self.output_size = output_size
        self.spk_embed_dim = spk_embed_dim
        self.vocab_size = vocab_size
        self.token_mel_ratio = token_mel_ratio
        self.pre_lookahead_len = pre_lookahead_len
        self.out_dtype = out_dtype   # bf16 halves mu/target/conds writeback if the decoder allows it

        k = jax.random.split(key, 5)
        # nn.Embedding(vocab_size, input_size)
        self.embed_table = jax.random.normal(k[0], (vocab_size, input_size), jnp.float32) * 0.02
        # nn.Linear(spk_embed_dim, output_size)
        self.spk_w = jax.random.normal(k[1], (spk_embed_dim, output_size), jnp.float32) * 0.1
        self.spk_b = jax.random.normal(k[2], (output_size,), jnp.float32) * 0.01
        # nn.Linear(encoder.output_size(), output_size); repeat stand-in -> enc_out = input_size
        self.proj_w = jax.random.normal(k[3], (input_size, output_size), jnp.float32) * 0.1
        self.proj_b = jax.random.normal(k[4], (output_size,), jnp.float32) * 0.01

        # Pre-fused, transposed f32 lookup table (output_size, vocab_size).
        # Valid only because the stand-in encoder (repeat upsample) is row-wise linear; with the
        # real conformer encoder the embedding lookup and encoder_proj stay separate kernels.
        self.fused_table_t = jnp.transpose(self.embed_table @ self.proj_w)
        self.proj_b_col = self.proj_b.reshape(output_size, 1).astype(jnp.float32)
        self.spk_b_row = self.spk_b.reshape(1, output_size).astype(jnp.float32)

    def forward(self, batch):
        token = batch["speech_token"].astype(jnp.int32)          # (B, T)
        token_len = batch["speech_token_len"].astype(jnp.int32)  # (B,)
        feat = batch["speech_feat"].astype(jnp.float32)          # (B, Tf, O) native layout
        feat_len = batch["speech_feat_len"].astype(jnp.int32)    # (B,)
        embedding = batch["embedding"].astype(jnp.float32)       # (B, spk_dim)

        # TODO(synk): torch uses random.random() < 0.5; fixed here for determinism.
        streaming = True

        # TODO(synk): real encoder is an injected UpsampleConformerEncoder; deterministic
        #             token_mel_ratio repeat stand-in, applied to the tiny int32 token ids only.
        tok_up = jnp.repeat(token, self.token_mel_ratio, axis=1)     # (B, T*r) int32
        h_len = token_len * self.token_mel_ratio                     # encoder output lengths

        # TODO(synk): torch uses a random prefix (skip w.p. 0.5, randint(0, 0.3*feat_len));
        #             deterministic floor(0.3 * feat_len) stand-in.
        prefix_idx = jnp.floor(0.3 * feat_len.astype(jnp.float32)).astype(jnp.int32)

        mu, target, conds, spks, mel_mask = fused_forward(
            h_len, prefix_idx, tok_up, self.fused_table_t, self.proj_b_col,
            embedding, self.spk_w, self.spk_b_row, feat, out_dtype=self.out_dtype)

        # TODO(synk): self.decoder.compute_loss (external CFM decoder) not reproducible here;
        #             return the exact tensors that would feed it.
        return {
            "mu": mu,            # h.transpose(1, 2)     (B, O, T*r)
            "target": target,    # feat.transpose(1, 2)  (B, O, Tf)
            "mask": mel_mask,    # mask.unsqueeze(1)     (B, 1, T*r)
            "spks": spks,        # (B, O)
            "cond": conds,       # (B, O, Tf)
            "streaming": streaming,
        }


# --------------------------------------------------------------------------------------
# main
# --------------------------------------------------------------------------------------
if __name__ == "__main__":
    key = jax.random.PRNGKey(0)
    k_mod, k_tok, k_feat, k_emb = jax.random.split(key, 4)

    B, T = 2, 64
    INPUT_SIZE, OUTPUT_SIZE, SPK_DIM, VOCAB = 32, 16, 16, 64
    TOKEN_MEL_RATIO = 2
    TMEL = T * TOKEN_MEL_RATIO          # 128 -> time axis lands on lanes (lane-dense stores)
    TF = TMEL

    model = StreamMaskedDiffWithXvecPallas(
        k_mod, input_size=INPUT_SIZE, output_size=OUTPUT_SIZE,
        spk_embed_dim=SPK_DIM, vocab_size=VOCAB, token_mel_ratio=TOKEN_MEL_RATIO)

    batch = {
        "speech_token": jax.random.randint(k_tok, (B, T), 0, VOCAB, dtype=jnp.int32),
        "speech_token_len": jnp.array([T, T - 16], dtype=jnp.int32),
        "speech_feat": jax.random.normal(k_feat, (B, TF, OUTPUT_SIZE), jnp.float32),
        "speech_feat_len": jnp.array([TF, TF - 28], dtype=jnp.int32),
        "embedding": jax.random.normal(k_emb, (B, SPK_DIM), jnp.float32),
    }

    out = model.forward(batch)
    jax.block_until_ready(out)

    # ---------------- correctness checks against a pure-JAX/numpy reference ----------------
    # spks: F.normalize + affine
    e = batch["embedding"]
    e_ref = e / jnp.maximum(jnp.linalg.norm(e, axis=1, keepdims=True), 1e-12)
    spks_ref = e_ref @ model.spk_w + model.spk_b
    np.testing.assert_allclose(np.asarray(out["spks"]), np.asarray(spks_ref),
                               rtol=5e-3, atol=5e-4)

    # mu: masked embedding -> repeat upsample -> encoder_proj
    tok = jnp.maximum(batch["speech_token"], 0)
    emb_ref = model.embed_table[tok]
    tmask = (jnp.arange(T)[None, :] < batch["speech_token_len"][:, None]).astype(jnp.float32)
    emb_ref = emb_ref * tmask[:, :, None]
    h_ref = jnp.repeat(emb_ref, TOKEN_MEL_RATIO, axis=1) @ model.proj_w + model.proj_b
    np.testing.assert_allclose(np.asarray(out["mu"]),
                               np.asarray(jnp.transpose(h_ref, (0, 2, 1))),
                               rtol=5e-3, atol=5e-4)

    # conds / target
    pfx = np.floor(0.3 * np.asarray(batch["speech_feat_len"], np.float32)).astype(np.int32)
    feat_np = np.asarray(batch["speech_feat"])
    conds_ref = np.zeros_like(feat_np)
    for i in range(B):
        conds_ref[i, :pfx[i]] = feat_np[i, :pfx[i]]
    np.testing.assert_allclose(np.asarray(out["cond"]), conds_ref.transpose(0, 2, 1),
                               rtol=5e-3, atol=1e-5)
    np.testing.assert_allclose(np.asarray(out["target"]), feat_np.transpose(0, 2, 1),
                               rtol=5e-3, atol=1e-5)

    # decoder mel mask
    hlen = np.asarray(batch["speech_token_len"]) * TOKEN_MEL_RATIO
    mask_ref = (np.arange(TMEL)[None, :] < hlen[:, None]).astype(np.float32)[:, None, :]
    np.testing.assert_allclose(np.asarray(out["mask"]), mask_ref)

    assert out["mu"].shape == (B, OUTPUT_SIZE, TMEL)
    assert out["cond"].shape == (B, OUTPUT_SIZE, TF)
    assert out["target"].shape == (B, OUTPUT_SIZE, TF)
    assert out["mask"].shape == (B, 1, TMEL)
    assert out["spks"].shape == (B, OUTPUT_SIZE)

    print("KERNEL_OK")
</pallas_src>

<mosaic_0001>
module attributes {stable_mosaic.version = 11 : i64} {
  func.func @_fused_kernel(%arg0: i32, %arg1: memref<2xi32, #tpu.memory_space<smem>>, %arg2: memref<2xi32, #tpu.memory_space<smem>>, %arg3: memref<2x128xi32, #tpu.memory_space<vmem>>, %arg4: memref<16x64xf32, #tpu.memory_space<vmem>>, %arg5: memref<16x1xf32, #tpu.memory_space<vmem>>, %arg6: memref<2x16xf32, #tpu.memory_space<vmem>>, %arg7: memref<16x16xf32, #tpu.memory_space<vmem>>, %arg8: memref<1x16xf32, #tpu.memory_space<vmem>>, %arg9: memref<2x128x16xf32, #tpu.memory_space<vmem>>, %arg10: memref<2x16x128xf32, #tpu.memory_space<vmem>>, %arg11: memref<2x16x128xf32, #tpu.memory_space<vmem>>, %arg12: memref<2x16x128xf32, #tpu.memory_space<vmem>>, %arg13: memref<2x16xf32, #tpu.memory_space<vmem>>, %arg14: memref<2x1x128xf32, #tpu.memory_space<vmem>>) attributes {dimension_semantics = [#tpu.dimension_semantics<parallel>], iteration_bounds = array<i64: 1>, scalar_prefetch = 2 : i64, scratch_operands = 0 : i64, tpu.core_type = #tpu.core_type<tc>, window_params = [{transform_indices = @transform_0, window_bounds = array<i64: 2, 128>}, {pipeline_mode = #tpu.pipeline_mode<synchronous>, transform_indices = @transform_1, window_bounds = array<i64: 16, 64>}, {pipeline_mode = #tpu.pipeline_mode<synchronous>, transform_indices = @transform_2, window_bounds = array<i64: 16, 1>}, {transform_indices = @transform_3, window_bounds = array<i64: 2, 16>}, {pipeline_mode = #tpu.pipeline_mode<synchronous>, transform_indices = @transform_4, window_bounds = array<i64: 16, 16>}, {pipeline_mode = #tpu.pipeline_mode<synchronous>, transform_indices = @transform_5, window_bounds = array<i64: 1, 16>}, {transform_indices = @transform_6, window_bounds = array<i64: 2, 128, 16>}, {transform_indices = @transform_7, window_bounds = array<i64: 2, 16, 128>}, {transform_indices = @transform_8, window_bounds = array<i64: 2, 16, 128>}, {transform_indices = @transform_9, window_bounds = array<i64: 2, 16, 128>}, {transform_indices = @transform_10, window_bounds = array<i64: 2, 16>}, {transform_indices = @transform_11, window_bounds = array<i64: 2, 1, 128>}]} {
    %c0 = arith.constant 0 : index
    %c0_0 = arith.constant 0 : index
    %0 = vector.load %arg6[%c0, %c0_0] : memref<2x16xf32, #tpu.memory_space<vmem>>, vector<2x16xf32>
    %1 = arith.mulf %0, %0 : vector<2x16xf32>
    %cst = arith.constant dense<0.000000e+00> : vector<2xf32>
    %2 = vector.multi_reduction <add>, %1, %cst [1] : vector<2x16xf32> to vector<2xf32>
    %3 = vector.shape_cast %2 : vector<2xf32> to vector<2x1xf32>
    %cst_1 = arith.constant 1.000000e-24 : f32
    %4 = vector.broadcast %cst_1 : f32 to vector<2x1xf32>
    %5 = arith.maximumf %3, %4 : vector<2x1xf32>
    %6 = math.rsqrt %5 : vector<2x1xf32>
    %7 = vector.broadcast %6 : vector<2x1xf32> to vector<2x16xf32>
    %8 = arith.mulf %0, %7 : vector<2x16xf32>
    %c0_2 = arith.constant 0 : index
    %c0_3 = arith.constant 0 : index
    %9 = vector.load %arg7[%c0_2, %c0_3] : memref<16x16xf32, #tpu.memory_space<vmem>>, vector<16x16xf32>
    %cst_4 = arith.constant dense<0.000000e+00> : vector<2x16xf32>
    %10 = tpu.matmul %8, %9, %cst_4 {dimension_numbers = #tpu.dot_dimension_numbers<[1], [0], [0], [1], [0, 0, 1, 1], [], []>} : vector<2x16xf32>, vector<16x16xf32>, vector<2x16xf32> -> vector<2x16xf32>
    %c0_5 = arith.constant 0 : index
    %c0_6 = arith.constant 0 : index
    %11 = vector.load %arg8[%c0_5, %c0_6] : memref<1x16xf32, #tpu.memory_space<vmem>>, vector<1x16xf32>
    %12 = vector.broadcast %11 : vector<1x16xf32> to vector<2x16xf32>
    %13 = arith.addf %10, %12 : vector<2x16xf32>
    %c0_7 = arith.constant 0 : index
    %c0_8 = arith.constant 0 : index
    %14 = vector.load %arg13[%c0_7, %c0_8] : memref<2x16xf32, #tpu.memory_space<vmem>>, vector<2x16xf32>
    tpu.vector_store %arg13[%c0_7, %c0_8], %13 {strides = array<i32>} : memref<2x16xf32, #tpu.memory_space<vmem>>, vector<2x16xf32>,
    %c0_9 = arith.constant 0 : index
    %c0_10 = arith.constant 0 : index
    %15 = vector.load %arg4[%c0_9, %c0_10] : memref<16x64xf32, #tpu.memory_space<vmem>>, vector<16x64xf32>
    %c0_11 = arith.constant 0 : index
    %c0_12 = arith.constant 0 : index
    %16 = vector.load %arg5[%c0_11, %c0_12] : memref<16x1xf32, #tpu.memory_space<vmem>>, vector<16x1xf32>
    %17 = tpu.iota {dimensions = array<i32: 0>} : vector<64x128xi32>
    %18 = tpu.iota {dimensions = array<i32: 1>} : vector<1x128xi32>
    %19 = tpu.iota {dimensions = array<i32: 1>} : vector<1x128xi32>
    %20 = tpu.iota {dimensions = array<i32: 0>} : vector<16x16xi32>
    %21 = tpu.iota {dimensions = array<i32: 1>} : vector<16x16xi32>
    %22 = arith.cmpi eq, %20, %21 : vector<16x16xi32>
    %23 = arith.extui %22 : vector<16x16xi1> to vector<16x16xi32>
    %24 = arith.sitofp %23 : vector<16x16xi32> to vector<16x16xf32>
    %c0_13 = arith.constant 0 : index
    %c0_14 = arith.constant 0 : index
    %25 = vector.load %arg3[%c0_13, %c0_14] : memref<2x128xi32, #tpu.memory_space<vmem>>, vector<2x128xi32>
    %c0_i32 = arith.constant 0 : i32
    %26 = vector.broadcast %c0_i32 : i32 to vector<2x128xi32>
    %27 = arith.maxsi %25, %26 : vector<2x128xi32>
    %c2_i32 = arith.constant 2 : i32
    %28 = arith.muli %arg0, %c2_i32 : i32
    %c0_i32_15 = arith.constant 0 : i32
    %29 = arith.addi %28, %c0_i32_15 : i32
    %30 = arith.index_cast %29 : i32 to index
    %31 = memref.load %arg1[%30] : memref<2xi32, #tpu.memory_space<smem>>
    %c2_i32_16 = arith.constant 2 : i32
    %32 = arith.muli %arg0, %c2_i32_16 : i32
    %c0_i32_17 = arith.constant 0 : i32
    %33 = arith.addi %32, %c0_i32_17 : i32
    %34 = arith.index_cast %33 : i32 to index
    %35 = memref.load %arg2[%34] : memref<2xi32, #tpu.memory_space<smem>>
    %36 = vector.broadcast %31 : i32 to vector<1x128xi32>
    %37 = arith.cmpi slt, %18, %36 : vector<1x128xi32>
    %38 = arith.extui %37 : vector<1x128xi1> to vector<1x128xi32>
    %39 = arith.sitofp %38 : vector<1x128xi32> to vector<1x128xf32>
    %c0_18 = arith.constant 0 : index
    %c0_19 = arith.constant 0 : index
    %c0_20 = arith.constant 0 : index
    %40 = vector.load %arg14[%c0_18, %c0_19, %c0_20] : memref<2x1x128xf32, #tpu.memory_space<vmem>>, vector<1x1x128xf32>
    %41 = vector.shape_cast %40 : vector<1x1x128xf32> to vector<1x128xf32>
    %42 = vector.shape_cast %39 : vector<1x128xf32> to vector<1x1x128xf32>
    tpu.vector_store %arg14[%c0_18, %c0_19, %c0_20], %42 {strides = array<i32>} : memref<2x1x128xf32, #tpu.memory_space<vmem>>, vector<1x1x128xf32>,
    %43 = vector.extract_strided_slice %27 {offsets = [0, 0], sizes = [1, 128], strides = [1, 1]} : vector<2x128xi32> to vector<1x128xi32>
    %44 = vector.broadcast %43 : vector<1x128xi32> to vector<64x128xi32>
    %45 = arith.cmpi eq, %17, %44 : vector<64x128xi32>
    %46 = arith.extui %45 : vector<64x128xi1> to vector<64x128xi32>
    %47 = arith.sitofp %46 : vector<64x128xi32> to vector<64x128xf32>
    %cst_21 = arith.constant dense<0.000000e+00> : vector<16x128xf32>
    %48 = tpu.matmul %15, %47, %cst_21 {dimension_numbers = #tpu.dot_dimension_numbers<[1], [0], [0], [1], [0, 0, 1, 1], [], []>} : vector<16x64xf32>, vector<64x128xf32>, vector<16x128xf32> -> vector<16x128xf32>
    %49 = vector.broadcast %39 : vector<1x128xf32> to vector<16x128xf32>
    %50 = arith.mulf %48, %49 : vector<16x128xf32>
    %51 = vector.broadcast %16 : vector<16x1xf32> to vector<16x128xf32>
    %52 = arith.addf %50, %51 : vector<16x128xf32>
    %c0_22 = arith.constant 0 : index
    %c0_23 = arith.constant 0 : index
    %c0_24 = arith.constant 0 : index
    %53 = vector.load %arg10[%c0_22, %c0_23, %c0_24] : memref<2x16x128xf32, #tpu.memory_space<vmem>>, vector<1x16x128xf32>
    %54 = vector.shape_cast %53 : vector<1x16x128xf32> to vector<16x128xf32>
    %55 = vector.shape_cast %52 : vector<16x128xf32> to vector<1x16x128xf32>
    tpu.vector_store %arg10[%c0_22, %c0_23, %c0_24], %55 {strides = array<i32>} : memref<2x16x128xf32, #tpu.memory_space<vmem>>, vector<1x16x128xf32>,
    %c0_25 = arith.constant 0 : index
    %c0_26 = arith.constant 0 : index
    %c0_27 = arith.constant 0 : index
    %56 = vector.load %arg9[%c0_25, %c0_26, %c0_27] : memref<2x128x16xf32, #tpu.memory_space<vmem>>, vector<1x128x16xf32>
    %57 = vector.shape_cast %56 : vector<1x128x16xf32> to vector<128x16xf32>
    %cst_28 = arith.constant dense<0.000000e+00> : vector<16x128xf32>
    %58 = tpu.matmul %24, %57, %cst_28 {dimension_numbers = #tpu.dot_dimension_numbers<[1], [1], [0], [0], [0, 0, 1, 0], [], []>} : vector<16x16xf32>, vector<128x16xf32>, vector<16x128xf32> -> vector<16x128xf32>
    %c0_29 = arith.constant 0 : index
    %c0_30 = arith.constant 0 : index
    %c0_31 = arith.constant 0 : index
    %59 = vector.load %arg11[%c0_29, %c0_30, %c0_31] : memref<2x16x128xf32, #tpu.memory_space<vmem>>, vector<1x16x128xf32>
    %60 = vector.shape_cast %59 : vector<1x16x128xf32> to vector<16x128xf32>
    %61 = vector.shape_cast %58 : vector<16x128xf32> to vector<1x16x128xf32>
    tpu.vector_store %arg11[%c0_29, %c0_30, %c0_31], %61 {strides = array<i32>} : memref<2x16x128xf32, #tpu.memory_space<vmem>>, vector<1x16x128xf32>,
    %62 = vector.broadcast %35 : i32 to vector<1x128xi32>
    %63 = arith.cmpi slt, %19, %62 : vector<1x128xi32>
    %64 = arith.extui %63 : vector<1x128xi1> to vector<1x128xi32>
    %65 = arith.sitofp %64 : vector<1x128xi32> to vector<1x128xf32>
    %66 = vector.broadcast %65 : vector<1x128xf32> to vector<16x128xf32>
    %67 = arith.mulf %58, %66 : vector<16x128xf32>
    %c0_32 = arith.constant 0 : index
    %c0_33 = arith.constant 0 : index
    %c0_34 = arith.constant 0 : index
    %68 = vector.load %arg12[%c0_32, %c0_33, %c0_34] : memref<2x16x128xf32, #tpu.memory_space<vmem>>, vector<1x16x128xf32>
    %69 = vector.shape_cast %68 : vector<1x16x128xf32> to vector<16x128xf32>
    %70 = vector.shape_cast %67 : vector<16x128xf32> to vector<1x16x128xf32>
    tpu.vector_store %arg12[%c0_32, %c0_33, %c0_34], %70 {strides = array<i32>} : memref<2x16x128xf32, #tpu.memory_space<vmem>>, vector<1x16x128xf32>,
    %c2_i32_35 = arith.constant 2 : i32
    %71 = arith.muli %arg0, %c2_i32_35 : i32
    %c1_i32 = arith.constant 1 : i32
    %72 = arith.addi %71, %c1_i32 : i32
    %73 = arith.index_cast %72 : i32 to index
    %74 = memref.load %arg1[%73] : memref<2xi32, #tpu.memory_space<smem>>
    %c2_i32_36 = arith.constant 2 : i32
    %75 = arith.muli %arg0, %c2_i32_36 : i32
    %c1_i32_37 = arith.constant 1 : i32
    %76 = arith.addi %75, %c1_i32_37 : i32
    %77 = arith.index_cast %76 : i32 to index
    %78 = memref.load %arg2[%77] : memref<2xi32, #tpu.memory_space<smem>>
    %79 = vector.broadcast %74 : i32 to vector<1x128xi32>
    %80 = arith.cmpi slt, %18, %79 : vector<1x128xi32>
    %81 = arith.extui %80 : vector<1x128xi1> to vector<1x128xi32>
    %82 = arith.sitofp %81 : vector<1x128xi32> to vector<1x128xf32>
    %c1 = arith.constant 1 : index
    %c0_38 = arith.constant 0 : index
    %c0_39 = arith.constant 0 : index
    %83 = vector.load %arg14[%c1, %c0_38, %c0_39] : memref<2x1x128xf32, #tpu.memory_space<vmem>>, vector<1x1x128xf32>
    %84 = vector.shape_cast %83 : vector<1x1x128xf32> to vector<1x128xf32>
    %85 = vector.shape_cast %82 : vector<1x128xf32> to vector<1x1x128xf32>
    tpu.vector_store %arg14[%c1, %c0_38, %c0_39], %85 {strides = array<i32>} : memref<2x1x128xf32, #tpu.memory_space<vmem>>, vector<1x1x128xf32>,
    %86 = vector.extract_strided_slice %27 {offsets = [1, 0], sizes = [1, 128], strides = [1, 1]} : vector<2x128xi32> to vector<1x128xi32>
    %87 = vector.broadcast %86 : vector<1x128xi32> to vector<64x128xi32>
    %88 = arith.cmpi eq, %17, %87 : vector<64x128xi32>
    %89 = arith.extui %88 : vector<64x128xi1> to vector<64x128xi32>
    %90 = arith.sitofp %89 : vector<64x128xi32> to vector<64x128xf32>
    %cst_40 = arith.constant dense<0.000000e+00> : vector<16x128xf32>
    %91 = tpu.matmul %15, %90, %cst_40 {dimension_numbers = #tpu.dot_dimension_numbers<[1], [0], [0], [1], [0, 0, 1, 1], [], []>} : vector<16x64xf32>, vector<64x128xf32>, vector<16x128xf32> -> vector<16x128xf32>
    %92 = vector.broadcast %82 : vector<1x128xf32> to vector<16x128xf32>
    %93 = arith.mulf %91, %92 : vector<16x128xf32>
    %94 = vector.broadcast %16 : vector<16x1xf32> to vector<16x128xf32>
    %95 = arith.addf %93, %94 : vector<16x128xf32>
    %c1_41 = arith.constant 1 : index
    %c0_42 = arith.constant 0 : index
    %c0_43 = arith.constant 0 : index
    %96 = vector.load %arg10[%c1_41, %c0_42, %c0_43] : memref<2x16x128xf32, #tpu.memory_space<vmem>>, vector<1x16x128xf32>
    %97 = vector.shape_cast %96 : vector<1x16x128xf32> to vector<16x128xf32>
    %98 = vector.shape_cast %95 : vector<16x128xf32> to vector<1x16x128xf32>
    tpu.vector_store %arg10[%c1_41, %c0_42, %c0_43], %98 {strides = array<i32>} : memref<2x16x128xf32, #tpu.memory_space<vmem>>, vector<1x16x128xf32>,
    %c1_44 = arith.constant 1 : index
    %c0_45 = arith.constant 0 : index
    %c0_46 = arith.constant 0 : index
    %99 = vector.load %arg9[%c1_44, %c0_45, %c0_46] : memref<2x128x16xf32, #tpu.memory_space<vmem>>, vector<1x128x16xf32>
    %100 = vector.shape_cast %99 : vector<1x128x16xf32> to vector<128x16xf32>
    %cst_47 = arith.constant dense<0.000000e+00> : vector<16x128xf32>
    %101 = tpu.matmul %24, %100, %cst_47 {dimension_numbers = #tpu.dot_dimension_numbers<[1], [1], [0], [0], [0, 0, 1, 0], [], []>} : vector<16x16xf32>, vector<128x16xf32>, vector<16x128xf32> -> vector<16x128xf32>
    %c1_48 = arith.constant 1 : index
    %c0_49 = arith.constant 0 : index
    %c0_50 = arith.constant 0 : index
    %102 = vector.load %arg11[%c1_48, %c0_49, %c0_50] : memref<2x16x128xf32, #tpu.memory_space<vmem>>, vector<1x16x128xf32>
    %103 = vector.shape_cast %102 : vector<1x16x128xf32> to vector<16x128xf32>
    %104 = vector.shape_cast %101 : vector<16x128xf32> to vector<1x16x128xf32>
    tpu.vector_store %arg11[%c1_48, %c0_49, %c0_50], %104 {strides = array<i32>} : memref<2x16x128xf32, #tpu.memory_space<vmem>>, vector<1x16x128xf32>,
    %105 = vector.broadcast %78 : i32 to vector<1x128xi32>
    %106 = arith.cmpi slt, %19, %105 : vector<1x128xi32>
    %107 = arith.extui %106 : vector<1x128xi1> to vector<1x128xi32>
    %108 = arith.sitofp %107 : vector<1x128xi32> to vector<1x128xf32>
    %109 = vector.broadcast %108 : vector<1x128xf32> to vector<16x128xf32>
    %110 = arith.mulf %101, %109 : vector<16x128xf32>
    %c1_51 = arith.constant 1 : index
    %c0_52 = arith.constant 0 : index
    %c0_53 = arith.constant 0 : index
    %111 = vector.load %arg12[%c1_51, %c0_52, %c0_53] : memref<2x16x128xf32, #tpu.memory_space<vmem>>, vector<1x16x128xf32>
    %112 = vector.shape_cast %111 : vector<1x16x128xf32> to vector<16x128xf32>
    %113 = vector.shape_cast %110 : vector<16x128xf32> to vector<1x16x128xf32>
    tpu.vector_store %arg12[%c1_51, %c0_52, %c0_53], %113 {strides = array<i32>} : memref<2x16x128xf32, #tpu.memory_space<vmem>>, vector<1x16x128xf32>,
    return
  }
  func.func @transform_0(%arg0: i32, %arg1: memref<2xi32, #tpu.memory_space<smem>>, %arg2: memref<2xi32, #tpu.memory_space<smem>>) -> (i32, i32) {
    %c0_i32 = arith.constant 0 : i32
    %c0_i32_0 = arith.constant 0 : i32
    return %arg0, %c0_i32 : i32, i32
  }
  func.func @transform_1(%arg0: i32, %arg1: memref<2xi32, #tpu.memory_space<smem>>, %arg2: memref<2xi32, #tpu.memory_space<smem>>) -> (i32, i32) {
    %c0_i32 = arith.constant 0 : i32
    %c0_i32_0 = arith.constant 0 : i32
    %c0_i32_1 = arith.constant 0 : i32
    return %c0_i32, %c0_i32_0 : i32, i32
  }
  func.func @transform_2(%arg0: i32, %arg1: memref<2xi32, #tpu.memory_space<smem>>, %arg2: memref<2xi32, #tpu.memory_space<smem>>) -> (i32, i32) {
    %c0_i32 = arith.constant 0 : i32
    %c0_i32_0 = arith.constant 0 : i32
    %c0_i32_1 = arith.constant 0 : i32
    return %c0_i32, %c0_i32_0 : i32, i32
  }
  func.func @transform_3(%arg0: i32, %arg1: memref<2xi32, #tpu.memory_space<smem>>, %arg2: memref<2xi32, #tpu.memory_space<smem>>) -> (i32, i32) {
    %c0_i32 = arith.constant 0 : i32
    %c0_i32_0 = arith.constant 0 : i32
    return %arg0, %c0_i32 : i32, i32
  }
  func.func @transform_4(%arg0: i32, %arg1: memref<2xi32, #tpu.memory_space<smem>>, %arg2: memref<2xi32, #tpu.memory_space<smem>>) -> (i32, i32) {
    %c0_i32 = arith.constant 0 : i32
    %c0_i32_0 = arith.constant 0 : i32
    %c0_i32_1 = arith.constant 0 : i32
    return %c0_i32, %c0_i32_0 : i32, i32
  }
  func.func @transform_5(%arg0: i32, %arg1: memref<2xi32, #tpu.memory_space<smem>>, %arg2: memref<2xi32, #tpu.memory_space<smem>>) -> (i32, i32) {
    %c0_i32 = arith.constant 0 : i32
    %c0_i32_0 = arith.constant 0 : i32
    %c0_i32_1 = arith.constant 0 : i32
    return %c0_i32, %c0_i32_0 : i32, i32
  }
  func.func @transform_6(%arg0: i32, %arg1: memref<2xi32, #tpu.memory_space<smem>>, %arg2: memref<2xi32, #tpu.memory_space<smem>>) -> (i32, i32, i32) {
    %c0_i32 = arith.constant 0 : i32
    %c0_i32_0 = arith.constant 0 : i32
    %c0_i32_1 = arith.constant 0 : i32
    return %arg0, %c0_i32, %c0_i32_0 : i32, i32, i32
  }
  func.func @transform_7(%arg0: i32, %arg1: memref<2xi32, #tpu.memory_space<smem>>, %arg2: memref<2xi32, #tpu.memory_space<smem>>) -> (i32, i32, i32) {
    %c0_i32 = arith.constant 0 : i32
    %c0_i32_0 = arith.constant 0 : i32
    %c0_i32_1 = arith.constant 0 : i32
    return %arg0, %c0_i32, %c0_i32_0 : i32, i32, i32
  }
  func.func @transform_8(%arg0: i32, %arg1: memref<2xi32, #tpu.memory_space<smem>>, %arg2: memref<2xi32, #tpu.memory_space<smem>>) -> (i32, i32, i32) {
    %c0_i32 = arith.constant 0 : i32
    %c0_i32_0 = arith.constant 0 : i32
    %c0_i32_1 = arith.constant 0 : i32
    return %arg0, %c0_i32, %c0_i32_0 : i32, i32, i32
  }
  func.func @transform_9(%arg0: i32, %arg1: memref<2xi32, #tpu.memory_space<smem>>, %arg2: memref<2xi32, #tpu.memory_space<smem>>) -> (i32, i32, i32) {
    %c0_i32 = arith.constant 0 : i32
    %c0_i32_0 = arith.constant 0 : i32
    %c0_i32_1 = arith.constant 0 : i32
    return %arg0, %c0_i32, %c0_i32_0 : i32, i32, i32
  }
  func.func @transform_10(%arg0: i32, %arg1: memref<2xi32, #tpu.memory_space<smem>>, %arg2: memref<2xi32, #tpu.memory_space<smem>>) -> (i32, i32) {
    %c0_i32 = arith.constant 0 : i32
    %c0_i32_0 = arith.constant 0 : i32
    return %arg0, %c0_i32 : i32, i32
  }
  func.func @transform_11(%arg0: i32, %arg1: memref<2xi32, #tpu.memory_space<smem>>, %arg2: memref<2xi32, #tpu.memory_space<smem>>) -> (i32, i32, i32) {
    %c0_i32 = arith.constant 0 : i32
    %c0_i32_0 = arith.constant 0 : i32
    %c0_i32_1 = arith.constant 0 : i32
    return %arg0, %c0_i32, %c0_i32_0 : i32, i32, i32
  }
}

</mosaic_0001>

<llo_original>
// kernel: tpu_custom_call.1
$region0: #{tpu_custom_call.1}
  #allocation0 [shape = 'u32[]', space=smem, size = 0x4, offset = 0x4, fixed_abs, tag = 'smem constant byte address 0x4 - core index']
  #allocation1 [shape = 'u32[144,128]{1,0:T(1,128)}', space=vmem, size = 0x12000, scoped, tag = 'internal scratch']
  #allocation2 [shape = 's32[1]{0}', space=sflag, size = 0x4, scoped, tag = 'scoped memory for tpu_custom_call.1']
  #allocation3 [shape = 'u8[512]{0}', space=smem, size = 0x200, scoped, tag = 'prefetched SMEM operand 0']
  #allocation4 [shape = 'u8[512]{0}', space=smem, size = 0x200, scoped, tag = 'prefetched SMEM operand 1']
  %s0 = inlined_call_operand.vmem [shape: s32[2], index: 0, kind: input, shape index: {}]
  %s1 = inlined_call_operand.vmem [shape: s32[2], index: 1, kind: input, shape index: {}]
  %s2 = inlined_call_operand.vmem [shape: s32[2,128], index: 2, kind: input, shape index: {}]
  %s3 = inlined_call_operand.vmem [shape: f32[16,64], index: 3, kind: input, shape index: {}]
  %s4 = inlined_call_operand.vmem [shape: f32[16,1], index: 4, kind: input, shape index: {}]
  %s5 = inlined_call_operand.vmem [shape: f32[2,16], index: 5, kind: input, shape index: {}]
  %s6 = inlined_call_operand.vmem [shape: f32[16,16], index: 6, kind: input, shape index: {}]
  %s7 = inlined_call_operand.vmem [shape: f32[1,16], index: 7, kind: input, shape index: {}]
  %s8 = inlined_call_operand.vmem [shape: f32[2,128,16], index: 8, kind: input, shape index: {}]
  %s9 = inlined_call_operand.hbm [shape: f32[2,16,128], index: 9, kind: output, shape index: {0}]
  %s10 = inlined_call_operand.hbm [shape: f32[2,16,128], index: 10, kind: output, shape index: {1}]
  %s11 = inlined_call_operand.hbm [shape: f32[2,16,128], index: 11, kind: output, shape index: {2}]
  %s12 = inlined_call_operand.hbm [shape: f32[2,16], index: 12, kind: output, shape index: {3}]
  %s13 = inlined_call_operand.hbm [shape: f32[2,1,128], index: 13, kind: output, shape index: {4}]
  %14 = xla_tuple %s9, %s10, %s11, %s12, %s13
  %s15 = sld [smem:[#allocation0]]
  $region70: #{tpu_custom_call.1} parent=0
    _
  %s17 = ssub.s32 1, %s15
  %s18 = scalar_select 0, %s17, %s15
  %s19 = sshll.u32 %s0, 4
  %s20 = int_to_ptr.vmem [resolvable:$true] %s19
  %22 = dma.vmem_to_smem %s20, 16, [#allocation3], [#allocation2]
  %s23 = sshll.u32 %s1, 4
  %s24 = int_to_ptr.vmem [resolvable:$true] %s23
  %26 = dma.vmem_to_smem %s24, 16, [#allocation4], [#allocation2]
  %27 = dma.done [#allocation2], 32
  %28 = sfence
  $region1: #{tpu_custom_call.1} parent=0
    #allocation5 [shape = 'u8[16384]{0}', space=vmem, size = 0x4000, scoped, tag = 'output window, operand 0, single buffered']
    #allocation6 [shape = 's32[1]{0}', space=sflag, size = 0x4, scoped, tag = 'scoped memory for tpu_custom_call.1']
    #allocation7 [shape = 'u8[16384]{0}', space=vmem, size = 0x4000, scoped, tag = 'output window, operand 1, single buffered']
    #allocation8 [shape = 's32[1]{0}', space=sflag, size = 0x4, scoped, tag = 'scoped memory for tpu_custom_call.1']
    #allocation9 [shape = 'u8[16384]{0}', space=vmem, size = 0x4000, scoped, tag = 'output window, operand 2, single buffered']
    #allocation10 [shape = 'u8[1024]{0}', space=vmem, size = 0x400, scoped, tag = 'output window, operand 3, single buffered']
    #allocation11 [shape = 's32[1]{0}', space=sflag, size = 0x4, scoped, tag = 'scoped memory for tpu_custom_call.1']
    #allocation12 [shape = 'u8[1024]{0}', space=vmem, size = 0x400, scoped, tag = 'output window, operand 4, single buffered']
    %29 = vsyncpa [#allocation6], 0
    %30 = vsyncpa [#allocation8], 0
    %31 = vsyncpa [#allocation11], 0
    // Predicated region
    $region2: #{tpu_custom_call.1} parent=1 // pred_check
      _
    $region3: #{tpu_custom_call.1} parent=1 // pred_check_branch
      %33 = sbr.rel (0) target = $region5
    $region4: #{tpu_custom_call.1} parent=1 // pred_region
      _
    $region5: #{tpu_custom_call.1} parent=1 // pred_fallthru
      _
    // Predicated region
    $region6: #{tpu_custom_call.1} parent=1 // pred_check
      _
    $region7: #{tpu_custom_call.1} parent=1 // pred_check_branch
      %35 = sbr.rel (0) target = $region9
    $region8: #{tpu_custom_call.1} parent=1 // pred_region
      _
    $region9: #{tpu_custom_call.1} parent=1 // pred_fallthru
      _
    // Predicated region
    $region10: #{tpu_custom_call.1} parent=1 // pred_check
      _
    $region11: #{tpu_custom_call.1} parent=1 // pred_check_branch
      %37 = sbr.rel (0) target = $region13
    $region12: #{tpu_custom_call.1} parent=1 // pred_region
      _
    $region13: #{tpu_custom_call.1} parent=1 // pred_fallthru
      _
    // Predicated region
    $region14: #{tpu_custom_call.1} parent=1 // pred_check
      _
    $region15: #{tpu_custom_call.1} parent=1 // pred_check_branch
      %39 = sbr.rel (0) target = $region17
    $region16: #{tpu_custom_call.1} parent=1 // pred_region
      _
    $region17: #{tpu_custom_call.1} parent=1 // pred_fallthru
      _
    // Predicated region
    $region18: #{tpu_custom_call.1} parent=1 // pred_check
      _
    $region19: #{tpu_custom_call.1} parent=1 // pred_check_branch
      %41 = sbr.rel (0) target = $region21
    $region20: #{tpu_custom_call.1} parent=1 // pred_region
      _
    $region21: #{tpu_custom_call.1} parent=1 // pred_fallthru
      _
    // Predicated region
    $region22: #{tpu_custom_call.1} parent=1 // pred_check
      _
    $region23: #{tpu_custom_call.1} parent=1 // pred_check_branch
      %43 = sbr.rel (0) target = $region25
    $region24: #{tpu_custom_call.1} parent=1 // pred_region
      _
    $region25: #{tpu_custom_call.1} parent=1 // pred_fallthru
      _
    // Predicated region
    $region26: #{tpu_custom_call.1} parent=1 // pred_check
      _
    $region27: #{tpu_custom_call.1} parent=1 // pred_check_branch
      %45 = sbr.rel (0) target = $region29
    $region28: #{tpu_custom_call.1} parent=1 // pred_region
      _
    $region29: #{tpu_custom_call.1} parent=1 // pred_fallthru
      _
    %v46 = vld [vmem:[%s5] sm:$0x3]
    %v47 = vmul.f32 %v46, %v46
    %vm48 = vcmask 123904
    %v49 = vsel %vm48, %v47, 0.0
    %50 = vadd.xlane.f32.xlu0 %v49
    %v51 = vpop.xlane.xlu0 %50
    %v52 = vmax.f32 %v51, 1e-24
    %v53 = vrsqrt.pop %v52
    %v54 = vmul.f32 %v46, %v53
    %v55 = vld [vmem:[%s6] sm:$0xff]
    %v56 = vld [vmem:[%s6 + $0x8] sm:$0xff]
    %v57 = vld [vmem:[%s7] sm:$0x1]
    %v59 = vlaneseq
    %v60 = vshrl.u32 %v59, 7
    %v61 = vsub.s32 0, %v60
    %v62 = vrot.slane %v57, %v61
    %vm64 = vcmask 130048
    %v66 = vsel %vm64, %v54, 0
    %68 = vmatprep.subr.mxu0 0.0
    %69 = vmatpush1.msra.mxu0 0.0
    %70 = vmatprep.subr.mxu0 0.0
    %71 = vmatpush1.msra.mxu0 0.0
    %72 = vmatprep.subr.mxu0 0.0
    %73 = vmatpush1.msra.mxu0 0.0
    %74 = vmatprep.subr.mxu0 0.0
    %75 = vmatpush1.msra.mxu0 0.0
    %76 = vmatprep.subr.mxu0 0.0
    %77 = vmatpush1.msra.mxu0 0.0
    %78 = vmatprep.subr.mxu0 0.0
    %79 = vmatpush1.msra.mxu0 0.0
    %80 = vmatprep.subr.mxu0 0.0
    %81 = vmatpush1.msra.mxu0 0.0
    %82 = vmatprep.subr.mxu0 0.0
    %83 = vmatpush1.msra.mxu0 0.0
    %84 = vmatprep.subr.mxu0 0.0
    %85 = vmatpush1.msra.mxu0 0.0
    %86 = vmatprep.subr.mxu0 0.0
    %87 = vmatpush1.msra.mxu0 0.0
    %88 = vmatprep.subr.mxu0 0.0
    %89 = vmatpush1.msra.mxu0 0.0
    %90 = vmatprep.subr.mxu0 0.0
    %91 = vmatpush1.msra.mxu0 0.0
    %92 = vmatprep.subr.mxu0 0.0
    %93 = vmatpush1.msra.mxu0 0.0
    %94 = vmatprep.subr.mxu0 0.0
    %95 = vmatpush1.msra.mxu0 0.0
    %96 = vmatprep.subr.mxu0 0.0
    %97 = vmatpush1.msra.mxu0 %v56
    %98 = vmatprep.subr.mxu0 0.0
    %99 = vmatpush1.msra.mxu0 %v55
    %100 = vmatprep.subr.mxu0 0.0
    %101 = vmatpush2.msra.mxu0 0.0
    %102 = vmatprep.subr.mxu0 0.0
    %103 = vmatpush2.msra.mxu0 0.0
    %104 = vmatprep.subr.mxu0 0.0
    %105 = vmatpush2.msra.mxu0 0.0
    %106 = vmatprep.subr.mxu0 0.0
    %107 = vmatpush2.msra.mxu0 0.0
    %108 = vmatprep.subr.mxu0 0.0
    %109 = vmatpush2.msra.mxu0 0.0
    %110 = vmatprep.subr.mxu0 0.0
    %111 = vmatpush2.msra.mxu0 0.0
    %112 = vmatprep.subr.mxu0 0.0
    %113 = vmatpush2.msra.mxu0 0.0
    %114 = vmatprep.subr.mxu0 0.0
    %115 = vmatpush2.msra.mxu0 0.0
    %116 = vmatprep.subr.mxu0 0.0
    %117 = vmatpush2.msra.mxu0 0.0
    %118 = vmatprep.subr.mxu0 0.0
    %119 = vmatpush2.msra.mxu0 0.0
    %120 = vmatprep.subr.mxu0 0.0
    %121 = vmatpush2.msra.mxu0 0.0
    %122 = vmatprep.subr.mxu0 0.0
    %123 = vmatpush2.msra.mxu0 0.0
    %124 = vmatprep.subr.mxu0 0.0
    %125 = vmatpush2.msra.mxu0 0.0
    %126 = vmatprep.subr.mxu0 0.0
    %127 = vmatpush2.msra.mxu0 0.0
    %128 = vmatprep.subr.mxu0 0.0
    %129 = vmatpush2.msra.mxu0 0.0
    %130 = vmatprep.subr.mxu0 0.0
    %131 = vmatpush2.msra.mxu0 0.0
    %132 = vmatprep.mubr.f32.mxu0 0.0
    %133 = vmatmul.mubr.f32.gmra.mxu0 %v66
    %v134 = vpop.f32.mrf.mxu0
    %v135 = vadd.f32 %v62, %v134
    %v136 = vpop.f32.mrf.mxu0
    %137 = vdwg.mxu0
    %138 = vst.msk [vmem:[#allocation10] sm:$0x3] %vm48, %v135
    %v139 = vld [vmem:[%s3] sm:$0xff]
    %v140 = vld [vmem:[%s3 + $0x8] sm:$0xff]
    %v141 = vld [vmem:[%s4] sm:$0xff]
    %v142 = vld [vmem:[%s4 + $0x8] sm:$0xff]
    %v143 = vlaneseq
    %v144 = vshrl.u32 %v143, 7
    %v145 = vadd.s32 %v144, 8
    %v146 = vadd.s32 %v144, 16
    %v147 = vadd.s32 %v144, 24
    %v148 = vadd.s32 %v144, 32
    %v149 = vadd.s32 %v144, 40
    %v150 = vadd.s32 %v144, 48
    %v151 = vadd.s32 %v144, 56
    %v152 = vlaneseq
    %v153 = vand.u32 %v152, 127
    %vm154 = vcmp.eq.s32.totalorder %v144, %v153
    %vm155 = vcmp.eq.s32.totalorder %v145, %v153
    %v156 = vsel %vm154, 1, 0
    %v157 = vsel %vm155, 1, 0
    %v158 = vcvt.s32.f32 %v156
    %v159 = vcvt.s32.f32 %v157
    %v160 = vld [vmem:[%s2] sm:$0x3]
    %vm161 = vcmp.gt.s32.totalorder %v160, 0
    %v162 = vsel %vm161, %v160, 0
    %s163 = smul.u32 0, 2
    %s164 = sld [smem:[#allocation3 + %s163]]
    %s165 = sld [smem:[#allocation4 + %s163]]
    %v166 = vstv %s164
    %vm167 = vcmp.lt.s32.totalorder %v153, %v166
    %v168 = vsel %vm167, 1, 0
    %v169 = vcvt.s32.f32 %v168
    %170 = vst [vmem:[#allocation12] sm:$0x1] %v169
    %v171 = vlaneseq
    %v172 = vshrl.u32 %v171, 7
    %v173 = vsub.s32 0, %v172
    %v174 = vrot.slane %v162, %v173
    %vm175 = vcmp.eq.s32.totalorder %v144, %v174
    %vm176 = vcmp.eq.s32.totalorder %v145, %v174
    %vm177 = vcmp.eq.s32.totalorder %v146, %v174
    %vm178 = vcmp.eq.s32.totalorder %v147, %v174
    %vm179 = vcmp.eq.s32.totalorder %v148, %v174
    %vm180 = vcmp.eq.s32.totalorder %v149, %v174
    %vm181 = vcmp.eq.s32.totalorder %v150, %v174
    %vm182 = vcmp.eq.s32.totalorder %v151, %v174
    %v183 = vsel %vm175, 1, 0
    %v184 = vsel %vm176, 1, 0
    %v185 = vsel %vm177, 1, 0
    %v186 = vsel %vm178, 1, 0
    %v187 = vsel %vm179, 1, 0
    %v188 = vsel %vm180, 1, 0
    %v189 = vsel %vm181, 1, 0
    %v190 = vsel %vm182, 1, 0
    %v191 = vcvt.s32.f32 %v183
    %v192 = vcvt.s32.f32 %v184
    %v193 = vcvt.s32.f32 %v185
    %v194 = vcvt.s32.f32 %v186
    %v195 = vcvt.s32.f32 %v187
    %v196 = vcvt.s32.f32 %v188
    %v197 = vcvt.s32.f32 %v189
    %v198 = vcvt.s32.f32 %v190
    %vm199 = vcmask 523264
    %v201 = vsel %vm199, %v139, 0
    %v204 = vsel %vm199, %v140, 0
    %206 = vmatprep.subr.mxu0 0.0
    %207 = vmatpush1.msra.mxu0 0.0
    %208 = vmatprep.subr.mxu0 0.0
    %209 = vmatpush1.msra.mxu0 0.0
    %210 = vmatprep.subr.mxu0 0.0
    %211 = vmatpush1.msra.mxu0 0.0
    %212 = vmatprep.subr.mxu0 0.0
    %213 = vmatpush1.msra.mxu0 0.0
    %214 = vmatprep.subr.mxu0 0.0
    %215 = vmatpush1.msra.mxu0 0.0
    %216 = vmatprep.subr.mxu0 0.0
    %217 = vmatpush1.msra.mxu0 0.0
    %218 = vmatprep.subr.mxu0 0.0
    %219 = vmatpush1.msra.mxu0 0.0
    %220 = vmatprep.subr.mxu0 0.0
    %221 = vmatpush1.msra.mxu0 0.0
    %222 = vmatprep.subr.mxu0 0.0
    %223 = vmatpush1.msra.mxu0 %v198
    %224 = vmatprep.subr.mxu0 0.0
    %225 = vmatpush1.msra.mxu0 %v197
    %226 = vmatprep.subr.mxu0 0.0
    %227 = vmatpush1.msra.mxu0 %v196
    %228 = vmatprep.subr.mxu0 0.0
    %229 = vmatpush1.msra.mxu0 %v195
    %230 = vmatprep.subr.mxu0 0.0
    %231 = vmatpush1.msra.mxu0 %v194
    %232 = vmatprep.subr.mxu0 0.0
    %233 = vmatpush1.msra.mxu0 %v193
    %234 = vmatprep.subr.mxu0 0.0
    %235 = vmatpush1.msra.mxu0 %v192
    %236 = vmatprep.subr.mxu0 0.0
    %237 = vmatpush1.msra.mxu0 %v191
    %238 = vmatprep.subr.mxu0 0.0
    %239 = vmatpush2.msra.mxu0 0.0
    %240 = vmatprep.subr.mxu0 0.0
    %241 = vmatpush2.msra.mxu0 0.0
    %242 = vmatprep.subr.mxu0 0.0
    %243 = vmatpush2.msra.mxu0 0.0
    %244 = vmatprep.subr.mxu0 0.0
    %245 = vmatpush2.msra.mxu0 0.0
    %246 = vmatprep.subr.mxu0 0.0
    %247 = vmatpush2.msra.mxu0 0.0
    %248 = vmatprep.subr.mxu0 0.0
    %249 = vmatpush2.msra.mxu0 0.0
    %250 = vmatprep.subr.mxu0 0.0
    %251 = vmatpush2.msra.mxu0 0.0
    %252 = vmatprep.subr.mxu0 0.0
    %253 = vmatpush2.msra.mxu0 0.0
    %254 = vmatprep.subr.mxu0 0.0
    %255 = vmatpush2.msra.mxu0 0.0
    %256 = vmatprep.subr.mxu0 0.0
    %257 = vmatpush2.msra.mxu0 0.0
    %258 = vmatprep.subr.mxu0 0.0
    %259 = vmatpush2.msra.mxu0 0.0
    %260 = vmatprep.subr.mxu0 0.0
    %261 = vmatpush2.msra.mxu0 0.0
    %262 = vmatprep.subr.mxu0 0.0
    %263 = vmatpush2.msra.mxu0 0.0
    %264 = vmatprep.subr.mxu0 0.0
    %265 = vmatpush2.msra.mxu0 0.0
    %266 = vmatprep.subr.mxu0 0.0
    %267 = vmatpush2.msra.mxu0 0.0
    %268 = vmatprep.subr.mxu0 0.0
    %269 = vmatpush2.msra.mxu0 0.0
    %270 = vmatprep.mubr.f32.mxu0 0.0
    %271 = vmatmul.mubr.f32.gmra.mxu0 %v201
    %v272 = vpop.f32.mrf.mxu0
    %v273 = vadd.f32 0.0, %v272
    %v274 = vpop.f32.mrf.mxu0
    %275 = vmatprep.mubr.f32.mxu0 0.0
    %276 = vmatmul.mubr.f32.gmra.mxu0 %v204
    %v277 = vpop.f32.mrf.mxu0
    %v278 = vadd.f32 0.0, %v277
    %v279 = vpop.f32.mrf.mxu0
    %280 = vdwg.mxu0
    %v281 = vmul.f32 %v273, %v169
    %v282 = vmul.f32 %v278, %v169
    %284 = vset.pattern.permute.xlu0 0
    %285 = vperm.xlu0 %284, %v141
    %v286 = vpop.permute.xlu0 %285
    %289 = vset.pattern.permute.xlu0 0
    %290 = vperm.xlu0 %289, %v142
    %v291 = vpop.permute.xlu0 %290
    %v293 = vadd.f32 %v281, %v286
    %v294 = vadd.f32 %v282, %v291
    %295 = vst [vmem:[#allocation5] sm:$0xff] %v293
    %296 = vst [vmem:[#allocation5 + $0x8] sm:$0xff] %v294
    %v297 = vld [vmem:[%s8] sm:$0xff]
    %v298 = vld [vmem:[%s8 + $0x8] sm:$0xff]
    %v299 = vld [vmem:[%s8 + $0x10] sm:$0xff]
    %v300 = vld [vmem:[%s8 + $0x18] sm:$0xff]
    %v301 = vld [vmem:[%s8 + $0x20] sm:$0xff]
    %v302 = vld [vmem:[%s8 + $0x28] sm:$0xff]
    %v303 = vld [vmem:[%s8 + $0x30] sm:$0xff]
    %v304 = vld [vmem:[%s8 + $0x38] sm:$0xff]
    %v305 = vld [vmem:[%s8 + $0x40] sm:$0xff]
    %v306 = vld [vmem:[%s8 + $0x48] sm:$0xff]
    %v307 = vld [vmem:[%s8 + $0x50] sm:$0xff]
    %v308 = vld [vmem:[%s8 + $0x58] sm:$0xff]
    %v309 = vld [vmem:[%s8 + $0x60] sm:$0xff]
    %v310 = vld [vmem:[%s8 + $0x68] sm:$0xff]
    %v311 = vld [vmem:[%s8 + $0x70] sm:$0xff]
    %v312 = vld [vmem:[%s8 + $0x78] sm:$0xff]
    %v314 = vsel %vm64, %v158, 0
    %v317 = vsel %vm64, %v159, 0
    %v320 = vsel %vm64, %v297, 0
    %v323 = vsel %vm64, %v298, 0
    %v326 = vsel %vm64, %v299, 0
    %v329 = vsel %vm64, %v300, 0
    %v332 = vsel %vm64, %v301, 0
    %v335 = vsel %vm64, %v302, 0
    %v338 = vsel %vm64, %v303, 0
    %v341 = vsel %vm64, %v304, 0
    %v344 = vsel %vm64, %v305, 0
    %v347 = vsel %vm64, %v306, 0
    %v350 = vsel %vm64, %v307, 0
    %v353 = vsel %vm64, %v308, 0
    %v356 = vsel %vm64, %v309, 0
    %v359 = vsel %vm64, %v310, 0
    %v362 = vsel %vm64, %v311, 0
    %v365 = vsel %vm64, %v312, 0
    %367 = vmatprep.subr.mxu0 0.0
    %368 = vmatpush1.xpose.msra.mxu0 %v365
    %369 = vmatprep.subr.mxu0 0.0
    %370 = vmatpush1.xpose.msra.mxu0 %v362
    %371 = vmatprep.subr.mxu0 0.0
    %372 = vmatpush1.xpose.msra.mxu0 %v359
    %373 = vmatprep.subr.mxu0 0.0
    %374 = vmatpush1.xpose.msra.mxu0 %v356
    %375 = vmatprep.subr.mxu0 0.0
    %376 = vmatpush1.xpose.msra.mxu0 %v353
    %377 = vmatprep.subr.mxu0 0.0
    %378 = vmatpush1.xpose.msra.mxu0 %v350
    %379 = vmatprep.subr.mxu0 0.0
    %380 = vmatpush1.xpose.msra.mxu0 %v347
    %381 = vmatprep.subr.mxu0 0.0
    %382 = vmatpush1.xpose.msra.mxu0 %v344
    %383 = vmatprep.subr.mxu0 0.0
    %384 = vmatpush1.xpose.msra.mxu0 %v341
    %385 = vmatprep.subr.mxu0 0.0
    %386 = vmatpush1.xpose.msra.mxu0 %v338
    %387 = vmatprep.subr.mxu0 0.0
    %388 = vmatpush1.xpose.msra.mxu0 %v335
    %389 = vmatprep.subr.mxu0 0.0
    %390 = vmatpush1.xpose.msra.mxu0 %v332
    %391 = vmatprep.subr.mxu0 0.0
    %392 = vmatpush1.xpose.msra.mxu0 %v329
    %393 = vmatprep.subr.mxu0 0.0
    %394 = vmatpush1.xpose.msra.mxu0 %v326
    %395 = vmatprep.subr.mxu0 0.0
    %396 = vmatpush1.xpose.msra.mxu0 %v323
    %397 = vmatprep.subr.mxu0 0.0
    %398 = vmatpush1.xpose.msra.mxu0 %v320
    %399 = vmatprep.subr.mxu0 0.0
    %400 = vmatpush2.xpose.msra.mxu0 0.0
    %401 = vmatprep.subr.mxu0 0.0
    %402 = vmatpush2.xpose.msra.mxu0 0.0
    %403 = vmatprep.subr.mxu0 0.0
    %404 = vmatpush2.xpose.msra.mxu0 0.0
    %405 = vmatprep.subr.mxu0 0.0
    %406 = vmatpush2.xpose.msra.mxu0 0.0
    %407 = vmatprep.subr.mxu0 0.0
    %408 = vmatpush2.xpose.msra.mxu0 0.0
    %409 = vmatprep.subr.mxu0 0.0
    %410 = vmatpush2.xpose.msra.mxu0 0.0
    %411 = vmatprep.subr.mxu0 0.0
    %412 = vmatpush2.xpose.msra.mxu0 0.0
    %413 = vmatprep.subr.mxu0 0.0
    %414 = vmatpush2.xpose.msra.mxu0 0.0
    %415 = vmatprep.subr.mxu0 0.0
    %416 = vmatpush2.xpose.msra.mxu0 0.0
    %417 = vmatprep.subr.mxu0 0.0
    %418 = vmatpush2.xpose.msra.mxu0 0.0
    %419 = vmatprep.subr.mxu0 0.0
    %420 = vmatpush2.xpose.msra.mxu0 0.0
    %421 = vmatprep.subr.mxu0 0.0
    %422 = vmatpush2.xpose.msra.mxu0 0.0
    %423 = vmatprep.subr.mxu0 0.0
    %424 = vmatpush2.xpose.msra.mxu0 0.0
    %425 = vmatprep.subr.mxu0 0.0
    %426 = vmatpush2.xpose.msra.mxu0 0.0
    %427 = vmatprep.subr.mxu0 0.0
    %428 = vmatpush2.xpose.msra.mxu0 0.0
    %429 = vmatprep.subr.mxu0 0.0
    %430 = vmatpush2.xpose.msra.mxu0 0.0
    %431 = vmatprep.mubr.f32.mxu0 0.0
    %432 = vmatmul.mubr.f32.gmra.mxu0 %v314
    %v433 = vpop.f32.mrf.mxu0
    %v434 = vadd.f32 0.0, %v433
    %v435 = vpop.f32.mrf.mxu0
    %436 = vmatprep.mubr.f32.mxu0 0.0
    %437 = vmatmul.mubr.f32.gmra.mxu0 %v317
    %v438 = vpop.f32.mrf.mxu0
    %v439 = vadd.f32 0.0, %v438
    %v440 = vpop.f32.mrf.mxu0
    %441 = vdwg.mxu0
    %442 = vst [vmem:[#allocation7] sm:$0xff] %v434
    %443 = vst [vmem:[#allocation7 + $0x8] sm:$0xff] %v439
    %v444 = vstv %s165
    %vm445 = vcmp.lt.s32.totalorder %v153, %v444
    %v446 = vsel %vm445, 1, 0
    %v447 = vcvt.s32.f32 %v446
    %v448 = vmul.f32 %v434, %v447
    %v449 = vmul.f32 %v439, %v447
    %450 = vst [vmem:[#allocation9] sm:$0xff] %v448
    %451 = vst [vmem:[#allocation9 + $0x8] sm:$0xff] %v449
    %s452 = sadd.s32 %s163, 1
    %s453 = sld [smem:[#allocation3 + %s452]]
    %s454 = sld [smem:[#allocation4 + %s452]]
    %v455 = vstv %s453
    %vm456 = vcmp.lt.s32.totalorder %v153, %v455
    %v457 = vsel %vm456, 1, 0
    %v458 = vcvt.s32.f32 %v457
    %s459 = scalar_lea.vmem [#allocation12], 1
    %460 = vst [vmem:[%s459] sm:$0x1] %v458
    %v461 = vlaneseq
    %v462 = vshrl.u32 %v461, 7
    %v463 = vsub.s32 1, %v462
    %v464 = vrot.slane %v162, %v463
    %vm465 = vcmp.eq.s32.totalorder %v144, %v464
    %vm466 = vcmp.eq.s32.totalorder %v145, %v464
    %vm467 = vcmp.eq.s32.totalorder %v146, %v464
    %vm468 = vcmp.eq.s32.totalorder %v147, %v464
    %vm469 = vcmp.eq.s32.totalorder %v148, %v464
    %vm470 = vcmp.eq.s32.totalorder %v149, %v464
    %vm471 = vcmp.eq.s32.totalorder %v150, %v464
    %vm472 = vcmp.eq.s32.totalorder %v151, %v464
    %v473 = vsel %vm465, 1, 0
    %v474 = vsel %vm466, 1, 0
    %v475 = vsel %vm467, 1, 0
    %v476 = vsel %vm468, 1, 0
    %v477 = vsel %vm469, 1, 0
    %v478 = vsel %vm470, 1, 0
    %v479 = vsel %vm471, 1, 0
    %v480 = vsel %vm472, 1, 0
    %v481 = vcvt.s32.f32 %v473
    %v482 = vcvt.s32.f32 %v474
    %v483 = vcvt.s32.f32 %v475
    %v484 = vcvt.s32.f32 %v476
    %v485 = vcvt.s32.f32 %v477
    %v486 = vcvt.s32.f32 %v478
    %v487 = vcvt.s32.f32 %v479
    %v488 = vcvt.s32.f32 %v480
    %489 = vmatprep.subr.mxu0 0.0
    %490 = vmatpush1.msra.mxu0 0.0
    %491 = vmatprep.subr.mxu0 0.0
    %492 = vmatpush1.msra.mxu0 0.0
    %493 = vmatprep.subr.mxu0 0.0
    %494 = vmatpush1.msra.mxu0 0.0
    %495 = vmatprep.subr.mxu0 0.0
    %496 = vmatpush1.msra.mxu0 0.0
    %497 = vmatprep.subr.mxu0 0.0
    %498 = vmatpush1.msra.mxu0 0.0
    %499 = vmatprep.subr.mxu0 0.0
    %500 = vmatpush1.msra.mxu0 0.0
    %501 = vmatprep.subr.mxu0 0.0
    %502 = vmatpush1.msra.mxu0 0.0
    %503 = vmatprep.subr.mxu0 0.0
    %504 = vmatpush1.msra.mxu0 0.0
    %505 = vmatprep.subr.mxu0 0.0
    %506 = vmatpush1.msra.mxu0 %v488
    %507 = vmatprep.subr.mxu0 0.0
    %508 = vmatpush1.msra.mxu0 %v487
    %509 = vmatprep.subr.mxu0 0.0
    %510 = vmatpush1.msra.mxu0 %v486
    %511 = vmatprep.subr.mxu0 0.0
    %512 = vmatpush1.msra.mxu0 %v485
    %513 = vmatprep.subr.mxu0 0.0
    %514 = vmatpush1.msra.mxu0 %v484
    %515 = vmatprep.subr.mxu0 0.0
    %516 = vmatpush1.msra.mxu0 %v483
    %517 = vmatprep.subr.mxu0 0.0
    %518 = vmatpush1.msra.mxu0 %v482
    %519 = vmatprep.subr.mxu0 0.0
    %520 = vmatpush1.msra.mxu0 %v481
    %521 = vmatprep.subr.mxu0 0.0
    %522 = vmatpush2.msra.mxu0 0.0
    %523 = vmatprep.subr.mxu0 0.0
    %524 = vmatpush2.msra.mxu0 0.0
    %525 = vmatprep.subr.mxu0 0.0
    %526 = vmatpush2.msra.mxu0 0.0
    %527 = vmatprep.subr.mxu0 0.0
    %528 = vmatpush2.msra.mxu0 0.0
    %529 = vmatprep.subr.mxu0 0.0
    %530 = vmatpush2.msra.mxu0 0.0
    %531 = vmatprep.subr.mxu0 0.0
    %532 = vmatpush2.msra.mxu0 0.0
    %533 = vmatprep.subr.mxu0 0.0
    %534 = vmatpush2.msra.mxu0 0.0
    %535 = vmatprep.subr.mxu0 0.0
    %536 = vmatpush2.msra.mxu0 0.0
    %537 = vmatprep.subr.mxu0 0.0
    %538 = vmatpush2.msra.mxu0 0.0
    %539 = vmatprep.subr.mxu0 0.0
    %540 = vmatpush2.msra.mxu0 0.0
    %541 = vmatprep.subr.mxu0 0.0
    %542 = vmatpush2.msra.mxu0 0.0
    %543 = vmatprep.subr.mxu0 0.0
    %544 = vmatpush2.msra.mxu0 0.0
    %545 = vmatprep.subr.mxu0 0.0
    %546 = vmatpush2.msra.mxu0 0.0
    %547 = vmatprep.subr.mxu0 0.0
    %548 = vmatpush2.msra.mxu0 0.0
    %549 = vmatprep.subr.mxu0 0.0
    %550 = vmatpush2.msra.mxu0 0.0
    %551 = vmatprep.subr.mxu0 0.0
    %552 = vmatpush2.msra.mxu0 0.0
    %553 = vmatprep.mubr.f32.mxu0 0.0
    %554 = vmatmul.mubr.f32.gmra.mxu0 %v201
    %v555 = vpop.f32.mrf.mxu0
    %v556 = vadd.f32 0.0, %v555
    %v557 = vpop.f32.mrf.mxu0
    %558 = vmatprep.mubr.f32.mxu0 0.0
    %559 = vmatmul.mubr.f32.gmra.mxu0 %v204
    %v560 = vpop.f32.mrf.mxu0
    %v561 = vadd.f32 0.0, %v560
    %v562 = vpop.f32.mrf.mxu0
    %563 = vdwg.mxu0
    %v564 = vmul.f32 %v556, %v458
    %v565 = vmul.f32 %v561, %v458
    %v566 = vadd.f32 %v564, %v286
    %v567 = vadd.f32 %v565, %v291
    %s568 = scalar_lea.vmem [#allocation5], 16
    %569 = vst [vmem:[%s568] sm:$0xff] %v566
    %570 = vst [vmem:[%s568 + $0x8] sm:$0xff] %v567
    %s571 = scalar_lea.vmem %s8, 128
    %v572 = vld [vmem:[%s571] sm:$0xff]
    %v573 = vld [vmem:[%s571 + $0x8] sm:$0xff]
    %v574 = vld [vmem:[%s571 + $0x10] sm:$0xff]
    %v575 = vld [vmem:[%s571 + $0x18] sm:$0xff]
    %v576 = vld [vmem:[%s571 + $0x20] sm:$0xff]
    %v577 = vld [vmem:[%s571 + $0x28] sm:$0xff]
    %v578 = vld [vmem:[%s571 + $0x30] sm:$0xff]
    %v579 = vld [vmem:[%s571 + $0x38] sm:$0xff]
    %v580 = vld [vmem:[%s571 + $0x40] sm:$0xff]
    %v581 = vld [vmem:[%s571 + $0x48] sm:$0xff]
    %v582 = vld [vmem:[%s571 + $0x50] sm:$0xff]
    %v583 = vld [vmem:[%s571 + $0x58] sm:$0xff]
    %v584 = vld [vmem:[%s571 + $0x60] sm:$0xff]
    %v585 = vld [vmem:[%s571 + $0x68] sm:$0xff]
    %v586 = vld [vmem:[%s571 + $0x70] sm:$0xff]
    %v587 = vld [vmem:[%s571 + $0x78] sm:$0xff]
    %v589 = vsel %vm64, %v572, 0
    %v592 = vsel %vm64, %v573, 0
    %v595 = vsel %vm64, %v574, 0
    %v598 = vsel %vm64, %v575, 0
    %v601 = vsel %vm64, %v576, 0
    %v604 = vsel %vm64, %v577, 0
    %v607 = vsel %vm64, %v578, 0
    %v610 = vsel %vm64, %v579, 0
    %v613 = vsel %vm64, %v580, 0
    %v616 = vsel %vm64, %v581, 0
    %v619 = vsel %vm64, %v582, 0
    %v622 = vsel %vm64, %v583, 0
    %v625 = vsel %vm64, %v584, 0
    %v628 = vsel %vm64, %v585, 0
    %v631 = vsel %vm64, %v586, 0
    %v634 = vsel %vm64, %v587, 0
    %636 = vmatprep.subr.mxu0 0.0
    %637 = vmatpush1.xpose.msra.mxu0 %v634
    %638 = vmatprep.subr.mxu0 0.0
    %639 = vmatpush1.xpose.msra.mxu0 %v631
    %640 = vmatprep.subr.mxu0 0.0
    %641 = vmatpush1.xpose.msra.mxu0 %v628
    %642 = vmatprep.subr.mxu0 0.0
    %643 = vmatpush1.xpose.msra.mxu0 %v625
    %644 = vmatprep.subr.mxu0 0.0
    %645 = vmatpush1.xpose.msra.mxu0 %v622
    %646 = vmatprep.subr.mxu0 0.0
    %647 = vmatpush1.xpose.msra.mxu0 %v619
    %648 = vmatprep.subr.mxu0 0.0
    %649 = vmatpush1.xpose.msra.mxu0 %v616
    %650 = vmatprep.subr.mxu0 0.0
    %651 = vmatpush1.xpose.msra.mxu0 %v613
    %652 = vmatprep.subr.mxu0 0.0
    %653 = vmatpush1.xpose.msra.mxu0 %v610
    %654 = vmatprep.subr.mxu0 0.0
    %655 = vmatpush1.xpose.msra.mxu0 %v607
    %656 = vmatprep.subr.mxu0 0.0
    %657 = vmatpush1.xpose.msra.mxu0 %v604
    %658 = vmatprep.subr.mxu0 0.0
    %659 = vmatpush1.xpose.msra.mxu0 %v601
    %660 = vmatprep.subr.mxu0 0.0
    %661 = vmatpush1.xpose.msra.mxu0 %v598
    %662 = vmatprep.subr.mxu0 0.0
    %663 = vmatpush1.xpose.msra.mxu0 %v595
    %664 = vmatprep.subr.mxu0 0.0
    %665 = vmatpush1.xpose.msra.mxu0 %v592
    %666 = vmatprep.subr.mxu0 0.0
    %667 = vmatpush1.xpose.msra.mxu0 %v589
    %668 = vmatprep.subr.mxu0 0.0
    %669 = vmatpush2.xpose.msra.mxu0 0.0
    %670 = vmatprep.subr.mxu0 0.0
    %671 = vmatpush2.xpose.msra.mxu0 0.0
    %672 = vmatprep.subr.mxu0 0.0
    %673 = vmatpush2.xpose.msra.mxu0 0.0
    %674 = vmatprep.subr.mxu0 0.0
    %675 = vmatpush2.xpose.msra.mxu0 0.0
    %676 = vmatprep.subr.mxu0 0.0
    %677 = vmatpush2.xpose.msra.mxu0 0.0
    %678 = vmatprep.subr.mxu0 0.0
    %679 = vmatpush2.xpose.msra.mxu0 0.0
    %680 = vmatprep.subr.mxu0 0.0
    %681 = vmatpush2.xpose.msra.mxu0 0.0
    %682 = vmatprep.subr.mxu0 0.0
    %683 = vmatpush2.xpose.msra.mxu0 0.0
    %684 = vmatprep.subr.mxu0 0.0
    %685 = vmatpush2.xpose.msra.mxu0 0.0
    %686 = vmatprep.subr.mxu0 0.0
    %687 = vmatpush2.xpose.msra.mxu0 0.0
    %688 = vmatprep.subr.mxu0 0.0
    %689 = vmatpush2.xpose.msra.mxu0 0.0
    %690 = vmatprep.subr.mxu0 0.0
    %691 = vmatpush2.xpose.msra.mxu0 0.0
    %692 = vmatprep.subr.mxu0 0.0
    %693 = vmatpush2.xpose.msra.mxu0 0.0
    %694 = vmatprep.subr.mxu0 0.0
    %695 = vmatpush2.xpose.msra.mxu0 0.0
    %696 = vmatprep.subr.mxu0 0.0
    %697 = vmatpush2.xpose.msra.mxu0 0.0
    %698 = vmatprep.subr.mxu0 0.0
    %699 = vmatpush2.xpose.msra.mxu0 0.0
    %700 = vmatprep.mubr.f32.mxu0 0.0
    %701 = vmatmul.mubr.f32.gmra.mxu0 %v314
    %v702 = vpop.f32.mrf.mxu0
    %v703 = vadd.f32 0.0, %v702
    %v704 = vpop.f32.mrf.mxu0
    %705 = vmatprep.mubr.f32.mxu0 0.0
    %706 = vmatmul.mubr.f32.gmra.mxu0 %v317
    %v707 = vpop.f32.mrf.mxu0
    %v708 = vadd.f32 0.0, %v707
    %v709 = vpop.f32.mrf.mxu0
    %710 = vdwg.mxu0
    %s711 = scalar_lea.vmem [#allocation7], 16
    %712 = vst [vmem:[%s711] sm:$0xff] %v703
    %713 = vst [vmem:[%s711 + $0x8] sm:$0xff] %v708
    %v714 = vstv %s454
    %vm715 = vcmp.lt.s32.totalorder %v153, %v714
    %v716 = vsel %vm715, 1, 0
    %v717 = vcvt.s32.f32 %v716
    %v718 = vmul.f32 %v703, %v717
    %v719 = vmul.f32 %v708, %v717
    %s720 = scalar_lea.vmem [#allocation9], 16
    %721 = vst [vmem:[%s720] sm:$0xff] %v718
    %722 = vst [vmem:[%s720 + $0x8] sm:$0xff] %v719
    // Predicated region
    $region30: #{tpu_custom_call.1} parent=1 // pred_check
      _
    $region31: #{tpu_custom_call.1} parent=1 // pred_check_branch
      %724 = sbr.rel (0) target = $region33
    $region32: #{tpu_custom_call.1} parent=1 // pred_region
      %s726 = ssub.s32 512, 512
      %727 = vsyncadd [#allocation6], %s726
      %s728 = sshll.u32 [#allocation5], 4
      %s729 = int_to_ptr.vmem [resolvable:$true] %s728
      %734 = dma.vmem_to_hbm [thread:$0]  %s729, 512, %s9, [#allocation6], 128, 128, 8
    $region33: #{tpu_custom_call.1} parent=1 // pred_fallthru
      _
    // Predicated region
    $region34: #{tpu_custom_call.1} parent=1 // pred_check
      _
    $region35: #{tpu_custom_call.1} parent=1 // pred_check_branch
      %736 = sbr.rel (0) target = $region37
    $region36: #{tpu_custom_call.1} parent=1 // pred_region
      %s738 = ssub.s32 512, 512
      %739 = vsyncadd [#allocation8], %s738
      %s740 = sshll.u32 [#allocation7], 4
      %s741 = int_to_ptr.vmem [resolvable:$true] %s740
      %746 = dma.vmem_to_hbm [thread:$0]  %s741, 512, %s10, [#allocation8], 128, 128, 8
    $region37: #{tpu_custom_call.1} parent=1 // pred_fallthru
      _
    // Predicated region
    $region38: #{tpu_custom_call.1} parent=1 // pred_check
      _
    $region39: #{tpu_custom_call.1} parent=1 // pred_check_branch
      %748 = sbr.rel (0) target = $region41
    $region40: #{tpu_custom_call.1} parent=1 // pred_region
      %s750 = ssub.s32 512, 512
      %751 = vsyncadd [#allocation8], %s750
      %s752 = sshll.u32 [#allocation9], 4
      %s753 = int_to_ptr.vmem [resolvable:$true] %s752
      %758 = dma.vmem_to_hbm [thread:$0]  %s753, 512, %s11, [#allocation8], 128, 128, 8
    $region41: #{tpu_custom_call.1} parent=1 // pred_fallthru
      _
    // Predicated region
    $region42: #{tpu_custom_call.1} parent=1 // pred_check
      _
    $region43: #{tpu_custom_call.1} parent=1 // pred_check_branch
      %760 = sbr.rel (0) target = $region45
    $region44: #{tpu_custom_call.1} parent=1 // pred_region
      %s762 = ssub.s32 32, 32
      %763 = vsyncadd [#allocation11], %s762
      %s765 = sshll.u32 [#allocation10], 4
      %s766 = int_to_ptr.vmem [resolvable:$true] %s765
      %768 = dma.vmem_to_hbm [thread:$0]  %s766, 32, %s12, [#allocation11]
    $region45: #{tpu_custom_call.1} parent=1 // pred_fallthru
      _
    // Predicated region
    $region46: #{tpu_custom_call.1} parent=1 // pred_check
      _
    $region47: #{tpu_custom_call.1} parent=1 // pred_check_branch
      %770 = sbr.rel (0) target = $region49
    $region48: #{tpu_custom_call.1} parent=1 // pred_region
      %s772 = ssub.s32 32, 32
      %773 = vsyncadd [#allocation11], %s772
      %s774 = sshll.u32 [#allocation12], 4
      %s775 = int_to_ptr.vmem [resolvable:$true] %s774
      %780 = dma.vmem_to_hbm [thread:$0]  %s775, 32, %s13, [#allocation11], 16, 16, 1
    $region49: #{tpu_custom_call.1} parent=1 // pred_fallthru
      _
    // Predicated region
    $region50: #{tpu_custom_call.1} parent=1 // pred_check
      _
    $region51: #{tpu_custom_call.1} parent=1 // pred_check_branch
      %782 = sbr.rel (0) target = $region53
    $region52: #{tpu_custom_call.1} parent=1 // pred_region
      %783 = dma.done [#allocation6], 512
    $region53: #{tpu_custom_call.1} parent=1 // pred_fallthru
      _
    // Predicated region
    $region54: #{tpu_custom_call.1} parent=1 // pred_check
      _
    $region55: #{tpu_custom_call.1} parent=1 // pred_check_branch
      %785 = sbr.rel (0) target = $region57
    $region56: #{tpu_custom_call.1} parent=1 // pred_region
      %786 = dma.done [#allocation8], 512
    $region57: #{tpu_custom_call.1} parent=1 // pred_fallthru
      _
    // Predicated region
    $region58: #{tpu_custom_call.1} parent=1 // pred_check
      _
    $region59: #{tpu_custom_call.1} parent=1 // pred_check_branch
      %788 = sbr.rel (0) target = $region61
    $region60: #{tpu_custom_call.1} parent=1 // pred_region
      %789 = dma.done [#allocation8], 512
    $region61: #{tpu_custom_call.1} parent=1 // pred_fallthru
      _
    // Predicated region
    $region62: #{tpu_custom_call.1} parent=1 // pred_check
      _
    $region63: #{tpu_custom_call.1} parent=1 // pred_check_branch
      %791 = sbr.rel (0) target = $region65
    $region64: #{tpu_custom_call.1} parent=1 // pred_region
      %792 = dma.done [#allocation11], 32
    $region65: #{tpu_custom_call.1} parent=1 // pred_fallthru
      _
    // Predicated region
    $region66: #{tpu_custom_call.1} parent=1 // pred_check
      _
    $region67: #{tpu_custom_call.1} parent=1 // pred_check_branch
      %794 = sbr.rel (0) target = $region69
    $region68: #{tpu_custom_call.1} parent=1 // pred_region
      %795 = dma.done [#allocation11], 32
    $region69: #{tpu_custom_call.1} parent=1 // pred_fallthru
      _
    %796 = vsyncpa [#allocation6], 1
    %797 = vsyncpa [#allocation8], 1
    %798 = vsyncpa [#allocation11], 1

</llo_original>
